<compile_context>
chip_gen: v7x
topology: tpu7x:2x2x1
jax: 0.10.0
libtpu: 0.0.40
codegen_flags: <defaults>
</compile_context>

<pallas_src>
import jax
import jax.numpy as jnp
from jax import lax
from jax.experimental import pallas as pl
from jax.experimental.pallas import tpu as pltpu

INPUT_STATE = 13       # state dim
OUTPUT_STATE = 4       # action dim
START_HIDDEN_Q = 64    # fc_s / fc_a width
SECOND_HIDDEN_Q = 32   # fc_cat width


def _round_up(n, m):
    return ((n + m - 1) // m) * m


def _cdiv(a, b):
    return -(-a // b)


def qnet_kernel(x_ref, a_ref, ws_ref, wa_ref, wcp_ref, wo_ref,
                b12_ref, bc_ref, bo_ref, qt_ref):
    """One batch tile of the QNet forward, transposed (batch-on-lanes) dataflow.

    x_ref  : [TB, 13]   state rows of this tile (as stored: batch on sublanes)
    a_ref  : [TB, 4]    action rows
    ws_ref : [64, 13]   fc_s.weight   (native PyTorch [out, in] layout)
    wa_ref : [64, 4]    fc_a.weight
    wcp_ref: [64, 64]   fc_cat.weight packed: rows 0-31 = Wc[:, :64],
                                              rows 32-63 = Wc[:, 64:]
    wo_ref : [1, 32]    fc_out.weight
    b12_ref: [128, 1]   [fc_s.bias ; fc_a.bias] as a column
    bc_ref : [32, 1]    fc_cat.bias as a column
    bo_ref : [1, 1]     fc_out.bias
    qt_ref : [1, TB]    q transposed -> lane-dense output block
    """
    f32 = jnp.float32
    # Contract dim 1 of both operands ("A @ B.T"): the NT matmul absorbs the
    # batch-major -> feature-major transpose, so everything downstream is a
    # fully lane-dense [feat, TB] tile.
    nt = (((1,), (1,)), ((), ()))

    # Layers 1+2 (fc_s / fc_a): h^T[o, t] = sum_k W[o, k] * in[t, k] + b[o].
    h1t = lax.dot_general(ws_ref[...], x_ref[...], nt, preferred_element_type=f32)
    h2t = lax.dot_general(wa_ref[...], a_ref[...], nt, preferred_element_type=f32)
    h1t = jnp.maximum(h1t + b12_ref[0:START_HIDDEN_Q, :], 0.0)           # [64, TB]
    h2t = jnp.maximum(h2t + b12_ref[START_HIDDEN_Q:2 * START_HIDDEN_Q, :], 0.0)

    # Layer 3 (fc_cat): concat([h1, h2]) @ Wc^T  ==  Wc[:, :64] @ h1^T
    #                                            +   Wc[:, 64:] @ h2^T,
    # so the concat disappears into two accumulating matmuls.
    h3t = jnp.dot(wcp_ref[0:SECOND_HIDDEN_Q, :], h1t, preferred_element_type=f32)
    h3t = h3t + jnp.dot(wcp_ref[SECOND_HIDDEN_Q:2 * SECOND_HIDDEN_Q, :], h2t,
                        preferred_element_type=f32)
    h3t = jnp.maximum(h3t + bc_ref[...], 0.0)                            # [32, TB]

    # Layer 4 (fc_out): q^T = Wo @ h3^T + bo  -> already lane-dense [1, TB].
    qt_ref[...] = (jnp.dot(wo_ref[...], h3t, preferred_element_type=f32)
                   + bo_ref[...])


def _pick_tile(batch, tile_b):
    """Batch tile (= lane dim of the transposed dataflow -> multiple of 128).

    Big tiles amortize the ~0.35us per-grid-step overhead; hugging B avoids
    computing/storing padded rows; >=2 grid steps lets v7x's two TensorCores
    split the "parallel" batch axis.  The 4096-row cap keeps double-buffered
    input blocks a few MiB, inside the default scoped-VMEM limit everywhere.
    """
    tile_b = int(min(max(tile_b, 128), 4096))
    n_tiles = max(1, _cdiv(batch, tile_b))
    if n_tiles == 1 and batch > 256:
        n_tiles = 2                       # v7x megacore: give it >=2 parallel steps
    tb = _round_up(_cdiv(batch, n_tiles), 128)
    return tb, n_tiles


def qnet_forward(x, a, packed_params, *, tile_b=2048):
    """q = QNet(x, a) for x: [B, 13], a: [B, 4] -> [B, 1] (float32)."""
    ws, wa, wcp, wo, b12, bc, bo = packed_params
    B = x.shape[0]
    tb, n_tiles = _pick_tile(B, tile_b)
    b_pad = tb * n_tiles

    x = x.astype(jnp.float32)
    a = a.astype(jnp.float32)

    flops = 2 * b_pad * (INPUT_STATE * START_HIDDEN_Q
                         + OUTPUT_STATE * START_HIDDEN_Q
                         + 2 * START_HIDDEN_Q * SECOND_HIDDEN_Q
                         + SECOND_HIDDEN_Q)
    bytes_accessed = 4 * (x.size + a.size + b_pad
                          + ws.size + wa.size + wcp.size + wo.size
                          + b12.size + bc.size + bo.size)

    const = lambda i: (0, 0)   # constant index map -> fetched once, VMEM-resident
    qt = pl.pallas_call(
        qnet_kernel,
        out_shape=jax.ShapeDtypeStruct((1, b_pad), jnp.float32),
        grid=(n_tiles,),
        in_specs=[
            pl.BlockSpec((tb, INPUT_STATE), lambda i: (i, 0)),           # x (tiled)
            pl.BlockSpec((tb, OUTPUT_STATE), lambda i: (i, 0)),          # a (tiled)
            pl.BlockSpec((START_HIDDEN_Q, INPUT_STATE), const),          # ws
            pl.BlockSpec((START_HIDDEN_Q, OUTPUT_STATE), const),         # wa
            pl.BlockSpec((2 * SECOND_HIDDEN_Q, START_HIDDEN_Q), const),  # wcp
            pl.BlockSpec((1, SECOND_HIDDEN_Q), const),                   # wo
            pl.BlockSpec((2 * START_HIDDEN_Q, 1), const),                # b12
            pl.BlockSpec((SECOND_HIDDEN_Q, 1), const),                   # bc
            pl.BlockSpec((1, 1), const),                                 # bo
        ],
        # Lane-dense q^T output: unmasked dense stores instead of [TB,1] vst.msk.
        out_specs=pl.BlockSpec((1, tb), lambda i: (0, i)),
        compiler_params=pltpu.CompilerParams(
            dimension_semantics=("parallel",)),
        cost_estimate=pl.CostEstimate(
            flops=flops, transcendentals=0, bytes_accessed=bytes_accessed),
    )(x, a, ws, wa, wcp, wo, b12, bc, bo)

    # [1, b_pad] -> [B, 1]; padded batch lanes (>= B) hold junk and are dropped.
    return qt[0, :B, None]


def pack_qnet_params(ws, bs, wa, ba, wc, bc, wo, bo):
    """Pack native PyTorch-layout QNet parameters into the kernel's slabs.

    ws: [64,13], bs: [64], wa: [64,4], ba: [64],
    wc: [32,128], bc: [32], wo: [1,32], bo: [1]   (all [out, in] / [out]).
    """
    f32 = jnp.float32
    wcp = jnp.concatenate([wc[:, :START_HIDDEN_Q], wc[:, START_HIDDEN_Q:]],
                          axis=0).astype(f32)                       # [64, 64]
    b12 = jnp.concatenate([bs, ba]).reshape(2 * START_HIDDEN_Q, 1).astype(f32)
    return (ws.astype(f32), wa.astype(f32), wcp, wo.astype(f32),
            b12, bc.reshape(SECOND_HIDDEN_Q, 1).astype(f32),
            bo.reshape(1, 1).astype(f32))


def init_linear_params(key, in_features, out_features):
    """PyTorch nn.Linear init: U(-1/sqrt(fan_in), 1/sqrt(fan_in)),
    weight [out, in], bias [out] (native layout)."""
    kw, kb = jax.random.split(key)
    bound = 1.0 / jnp.sqrt(jnp.float32(in_features))
    w = jax.random.uniform(kw, (out_features, in_features),
                           minval=-bound, maxval=bound, dtype=jnp.float32)
    b = jax.random.uniform(kb, (out_features,),
                           minval=-bound, maxval=bound, dtype=jnp.float32)
    return w, b


def make_raw_params(key):
    k1, k2, k3, k4 = jax.random.split(key, 4)
    ws, bs = init_linear_params(k1, INPUT_STATE, START_HIDDEN_Q)
    wa, ba = init_linear_params(k2, OUTPUT_STATE, START_HIDDEN_Q)
    wc, bc = init_linear_params(k3, START_HIDDEN_Q * 2, SECOND_HIDDEN_Q)
    wo, bo = init_linear_params(k4, SECOND_HIDDEN_Q, 1)
    return ws, bs, wa, ba, wc, bc, wo, bo


def qnet_reference(x, a, raw_params):
    """Pure-JAX reference at HIGHEST matmul precision (exact f32)."""
    ws, bs, wa, ba, wc, bc, wo, bo = raw_params
    hp = jax.lax.Precision.HIGHEST
    h1 = jnp.maximum(jnp.dot(x, ws.T, precision=hp) + bs, 0.0)
    h2 = jnp.maximum(jnp.dot(a, wa.T, precision=hp) + ba, 0.0)
    cat = jnp.concatenate([h1, h2], axis=1)
    h3 = jnp.maximum(jnp.dot(cat, wc.T, precision=hp) + bc, 0.0)
    return jnp.dot(h3, wo.T, precision=hp) + bo


if __name__ == "__main__":
    key = jax.random.PRNGKey(0)
    k_params, k_x, k_a, k_x2, k_a2 = jax.random.split(key, 5)

    raw_params = make_raw_params(k_params)
    packed = pack_qnet_params(*raw_params)

    # Kernel matmuls run in f32 on the MXU with f32 accumulation; reference is
    # HIGHEST precision, so 1e-3 leaves ample margin without hiding regressions.
    ATOL = RTOL = 1e-3

    # Small batch (acting path): single grid step, masked boundary block,
    # zero wrapper-side input surgery.
    B = 8
    x = jax.random.normal(k_x, (B, INPUT_STATE), dtype=jnp.float32)
    a = jax.random.normal(k_a, (B, OUTPUT_STATE), dtype=jnp.float32)
    q = jax.block_until_ready(qnet_forward(x, a, packed))
    q_ref = qnet_reference(x, a, raw_params)
    assert q.shape == (B, 1)
    err = float(jnp.max(jnp.abs(q - q_ref)))
    assert jnp.allclose(q, q_ref, atol=ATOL, rtol=RTOL), err

    # Larger ragged batch: exercises batch tiling, a >=2-step "parallel" grid
    # (v7x megacore) and a partially out-of-bounds final input block.
    B2 = 600
    x2 = jax.random.normal(k_x2, (B2, INPUT_STATE), dtype=jnp.float32)
    a2 = jax.random.normal(k_a2, (B2, OUTPUT_STATE), dtype=jnp.float32)
    q2 = jax.block_until_ready(qnet_forward(x2, a2, packed, tile_b=2048))
    q2_ref = qnet_reference(x2, a2, raw_params)
    assert q2.shape == (B2, 1)
    err2 = float(jnp.max(jnp.abs(q2 - q2_ref)))
    assert jnp.allclose(q2, q2_ref, atol=ATOL, rtol=RTOL), err2

    print("KERNEL_OK")
</pallas_src>

<mosaic_0001>
module attributes {stable_mosaic.version = 11 : i64} {
  func.func @qnet_kernel(%arg0: i32, %arg1: memref<128x13xf32, #tpu.memory_space<vmem>>, %arg2: memref<128x4xf32, #tpu.memory_space<vmem>>, %arg3: memref<64x13xf32, #tpu.memory_space<vmem>>, %arg4: memref<64x4xf32, #tpu.memory_space<vmem>>, %arg5: memref<64x64xf32, #tpu.memory_space<vmem>>, %arg6: memref<1x32xf32, #tpu.memory_space<vmem>>, %arg7: memref<128x1xf32, #tpu.memory_space<vmem>>, %arg8: memref<32x1xf32, #tpu.memory_space<vmem>>, %arg9: memref<1x1xf32, #tpu.memory_space<vmem>>, %arg10: memref<1x128xf32, #tpu.memory_space<vmem>>) attributes {dimension_semantics = [#tpu.dimension_semantics<parallel>], iteration_bounds = array<i64: 1>, scalar_prefetch = 0 : i64, scratch_operands = 0 : i64, tpu.core_type = #tpu.core_type<tc>, window_params = [{transform_indices = @transform_0, window_bounds = array<i64: 128, 13>}, {transform_indices = @transform_1, window_bounds = array<i64: 128, 4>}, {pipeline_mode = #tpu.pipeline_mode<synchronous>, transform_indices = @transform_2, window_bounds = array<i64: 64, 13>}, {pipeline_mode = #tpu.pipeline_mode<synchronous>, transform_indices = @transform_3, window_bounds = array<i64: 64, 4>}, {pipeline_mode = #tpu.pipeline_mode<synchronous>, transform_indices = @transform_4, window_bounds = array<i64: 64, 64>}, {pipeline_mode = #tpu.pipeline_mode<synchronous>, transform_indices = @transform_5, window_bounds = array<i64: 1, 32>}, {pipeline_mode = #tpu.pipeline_mode<synchronous>, transform_indices = @transform_6, window_bounds = array<i64: 128, 1>}, {pipeline_mode = #tpu.pipeline_mode<synchronous>, transform_indices = @transform_7, window_bounds = array<i64: 32, 1>}, {pipeline_mode = #tpu.pipeline_mode<synchronous>, transform_indices = @transform_8, window_bounds = array<i64: 1, 1>}, {transform_indices = @transform_9, window_bounds = array<i64: 1, 128>}]} {
    %c0 = arith.constant 0 : index
    %c0_0 = arith.constant 0 : index
    %0 = vector.load %arg3[%c0, %c0_0] : memref<64x13xf32, #tpu.memory_space<vmem>>, vector<64x13xf32>
    %c0_1 = arith.constant 0 : index
    %c0_2 = arith.constant 0 : index
    %1 = vector.load %arg1[%c0_1, %c0_2] : memref<128x13xf32, #tpu.memory_space<vmem>>, vector<128x13xf32>
    %cst = arith.constant dense<0.000000e+00> : vector<64x128xf32>
    %2 = tpu.matmul %0, %1, %cst {dimension_numbers = #tpu.dot_dimension_numbers<[1], [1], [0], [0], [0, 0, 1, 0], [], []>} : vector<64x13xf32>, vector<128x13xf32>, vector<64x128xf32> -> vector<64x128xf32>
    %c0_3 = arith.constant 0 : index
    %c0_4 = arith.constant 0 : index
    %3 = vector.load %arg4[%c0_3, %c0_4] : memref<64x4xf32, #tpu.memory_space<vmem>>, vector<64x4xf32>
    %c0_5 = arith.constant 0 : index
    %c0_6 = arith.constant 0 : index
    %4 = vector.load %arg2[%c0_5, %c0_6] : memref<128x4xf32, #tpu.memory_space<vmem>>, vector<128x4xf32>
    %cst_7 = arith.constant dense<0.000000e+00> : vector<64x128xf32>
    %5 = tpu.matmul %3, %4, %cst_7 {dimension_numbers = #tpu.dot_dimension_numbers<[1], [1], [0], [0], [0, 0, 1, 0], [], []>} : vector<64x4xf32>, vector<128x4xf32>, vector<64x128xf32> -> vector<64x128xf32>
    %c0_8 = arith.constant 0 : index
    %c0_9 = arith.constant 0 : index
    %6 = vector.load %arg7[%c0_8, %c0_9] : memref<128x1xf32, #tpu.memory_space<vmem>>, vector<64x1xf32>
    %7 = vector.broadcast %6 : vector<64x1xf32> to vector<64x128xf32>
    %8 = arith.addf %2, %7 : vector<64x128xf32>
    %cst_10 = arith.constant 0.000000e+00 : f32
    %9 = vector.broadcast %cst_10 : f32 to vector<64x128xf32>
    %10 = arith.maximumf %8, %9 : vector<64x128xf32>
    %c64 = arith.constant 64 : index
    %c0_11 = arith.constant 0 : index
    %11 = vector.load %arg7[%c64, %c0_11] : memref<128x1xf32, #tpu.memory_space<vmem>>, vector<64x1xf32>
    %12 = vector.broadcast %11 : vector<64x1xf32> to vector<64x128xf32>
    %13 = arith.addf %5, %12 : vector<64x128xf32>
    %cst_12 = arith.constant 0.000000e+00 : f32
    %14 = vector.broadcast %cst_12 : f32 to vector<64x128xf32>
    %15 = arith.maximumf %13, %14 : vector<64x128xf32>
    %c0_13 = arith.constant 0 : index
    %c0_14 = arith.constant 0 : index
    %16 = vector.load %arg5[%c0_13, %c0_14] : memref<64x64xf32, #tpu.memory_space<vmem>>, vector<32x64xf32>
    %cst_15 = arith.constant dense<0.000000e+00> : vector<32x128xf32>
    %17 = tpu.matmul %16, %10, %cst_15 {dimension_numbers = #tpu.dot_dimension_numbers<[1], [0], [0], [1], [0, 0, 1, 1], [], []>} : vector<32x64xf32>, vector<64x128xf32>, vector<32x128xf32> -> vector<32x128xf32>
    %c32 = arith.constant 32 : index
    %c0_16 = arith.constant 0 : index
    %18 = vector.load %arg5[%c32, %c0_16] : memref<64x64xf32, #tpu.memory_space<vmem>>, vector<32x64xf32>
    %cst_17 = arith.constant dense<0.000000e+00> : vector<32x128xf32>
    %19 = tpu.matmul %18, %15, %cst_17 {dimension_numbers = #tpu.dot_dimension_numbers<[1], [0], [0], [1], [0, 0, 1, 1], [], []>} : vector<32x64xf32>, vector<64x128xf32>, vector<32x128xf32> -> vector<32x128xf32>
    %20 = arith.addf %17, %19 : vector<32x128xf32>
    %c0_18 = arith.constant 0 : index
    %c0_19 = arith.constant 0 : index
    %21 = vector.load %arg8[%c0_18, %c0_19] : memref<32x1xf32, #tpu.memory_space<vmem>>, vector<32x1xf32>
    %22 = vector.broadcast %21 : vector<32x1xf32> to vector<32x128xf32>
    %23 = arith.addf %20, %22 : vector<32x128xf32>
    %cst_20 = arith.constant 0.000000e+00 : f32
    %24 = vector.broadcast %cst_20 : f32 to vector<32x128xf32>
    %25 = arith.maximumf %23, %24 : vector<32x128xf32>
    %c0_21 = arith.constant 0 : index
    %c0_22 = arith.constant 0 : index
    %26 = vector.load %arg6[%c0_21, %c0_22] : memref<1x32xf32, #tpu.memory_space<vmem>>, vector<1x32xf32>
    %cst_23 = arith.constant dense<0.000000e+00> : vector<1x128xf32>
    %27 = tpu.matmul %26, %25, %cst_23 {dimension_numbers = #tpu.dot_dimension_numbers<[1], [0], [0], [1], [0, 0, 1, 1], [], []>} : vector<1x32xf32>, vector<32x128xf32>, vector<1x128xf32> -> vector<1x128xf32>
    %c0_24 = arith.constant 0 : index
    %c0_25 = arith.constant 0 : index
    %28 = vector.load %arg9[%c0_24, %c0_25] : memref<1x1xf32, #tpu.memory_space<vmem>>, vector<1x1xf32>
    %29 = vector.broadcast %28 : vector<1x1xf32> to vector<1x128xf32>
    %30 = arith.addf %27, %29 : vector<1x128xf32>
    %c0_26 = arith.constant 0 : index
    %c0_27 = arith.constant 0 : index
    %31 = vector.load %arg10[%c0_26, %c0_27] : memref<1x128xf32, #tpu.memory_space<vmem>>, vector<1x128xf32>
    tpu.vector_store %arg10[%c0_26, %c0_27], %30 {strides = array<i32>} : memref<1x128xf32, #tpu.memory_space<vmem>>, vector<1x128xf32>,
    return
  }
  func.func @transform_0(%arg0: i32) -> (i32, i32) {
    %c0_i32 = arith.constant 0 : i32
    %c0_i32_0 = arith.constant 0 : i32
    return %arg0, %c0_i32 : i32, i32
  }
  func.func @transform_1(%arg0: i32) -> (i32, i32) {
    %c0_i32 = arith.constant 0 : i32
    %c0_i32_0 = arith.constant 0 : i32
    return %arg0, %c0_i32 : i32, i32
  }
  func.func @transform_2(%arg0: i32) -> (i32, i32) {
    %c0_i32 = arith.constant 0 : i32
    %c0_i32_0 = arith.constant 0 : i32
    %c0_i32_1 = arith.constant 0 : i32
    return %c0_i32, %c0_i32_0 : i32, i32
  }
  func.func @transform_3(%arg0: i32) -> (i32, i32) {
    %c0_i32 = arith.constant 0 : i32
    %c0_i32_0 = arith.constant 0 : i32
    %c0_i32_1 = arith.constant 0 : i32
    return %c0_i32, %c0_i32_0 : i32, i32
  }
  func.func @transform_4(%arg0: i32) -> (i32, i32) {
    %c0_i32 = arith.constant 0 : i32
    %c0_i32_0 = arith.constant 0 : i32
    %c0_i32_1 = arith.constant 0 : i32
    return %c0_i32, %c0_i32_0 : i32, i32
  }
  func.func @transform_5(%arg0: i32) -> (i32, i32) {
    %c0_i32 = arith.constant 0 : i32
    %c0_i32_0 = arith.constant 0 : i32
    %c0_i32_1 = arith.constant 0 : i32
    return %c0_i32, %c0_i32_0 : i32, i32
  }
  func.func @transform_6(%arg0: i32) -> (i32, i32) {
    %c0_i32 = arith.constant 0 : i32
    %c0_i32_0 = arith.constant 0 : i32
    %c0_i32_1 = arith.constant 0 : i32
    return %c0_i32, %c0_i32_0 : i32, i32
  }
  func.func @transform_7(%arg0: i32) -> (i32, i32) {
    %c0_i32 = arith.constant 0 : i32
    %c0_i32_0 = arith.constant 0 : i32
    %c0_i32_1 = arith.constant 0 : i32
    return %c0_i32, %c0_i32_0 : i32, i32
  }
  func.func @transform_8(%arg0: i32) -> (i32, i32) {
    %c0_i32 = arith.constant 0 : i32
    %c0_i32_0 = arith.constant 0 : i32
    %c0_i32_1 = arith.constant 0 : i32
    return %c0_i32, %c0_i32_0 : i32, i32
  }
  func.func @transform_9(%arg0: i32) -> (i32, i32) {
    %c0_i32 = arith.constant 0 : i32
    %c0_i32_0 = arith.constant 0 : i32
    return %c0_i32, %arg0 : i32, i32
  }
}

</mosaic_0001>

<llo_original>
// kernel: tpu_custom_call.1
$region0: #{tpu_custom_call.1}
  #allocation0 [shape = 'u32[]', space=smem, size = 0x4, offset = 0x4, fixed_abs, tag = 'smem constant byte address 0x4 - core index']
  #allocation1 [shape = 'u32[144,128]{1,0:T(1,128)}', space=vmem, size = 0x12000, scoped, tag = 'internal scratch']
  #allocation2 [shape = 'f32[1,1]{1,0:T(1,128)S(1)}', space=vmem, size = 0x200, scoped, tag = 'scoped memory for tpu_custom_call.1']
  %s0 = inlined_call_operand.vmem [shape: f32[8,13], index: 0, kind: input, shape index: {}]
  %s1 = inlined_call_operand.vmem [shape: f32[8,4], index: 1, kind: input, shape index: {}]
  %s2 = inlined_call_operand.vmem [shape: f32[64,13], index: 2, kind: input, shape index: {}]
  %s3 = inlined_call_operand.vmem [shape: f32[64,4], index: 3, kind: input, shape index: {}]
  %s4 = inlined_call_operand.vmem [shape: f32[64,64], index: 4, kind: input, shape index: {}]
  %s5 = inlined_call_operand.vmem [shape: f32[1,32], index: 5, kind: input, shape index: {}]
  %s6 = inlined_call_operand.vmem [shape: f32[128,1], index: 6, kind: input, shape index: {}]
  %s7 = inlined_call_operand.vmem [shape: f32[32,1], index: 7, kind: input, shape index: {}]
  %s8 = inlined_call_operand.<no memory space> [shape: f32[1,1], index: 8, kind: input, shape index: {}]
  %s9 = inlined_call_operand.hbm [shape: f32[1,128], index: 9, kind: output, shape index: {}]
  %s10 = sld [smem:[#allocation0]]
  $region46: #{tpu_custom_call.1} parent=0
    _
  %s12 = ssub.s32 1, %s10
  %s13 = scalar_select 0, %s12, %s10
  %v14 = vstv %s8
  %15 = vst [vmem:[#allocation2] sm:$0x1] %v14
  $region1: #{tpu_custom_call.1} parent=0
    #allocation3 [shape = 'u8[512]{0}', space=vmem, size = 0x400, scoped, tag = 'output window, operand 0, single buffered']
    #allocation4 [shape = 's32[1]{0}', space=sflag, size = 0x4, scoped, tag = 'scoped memory for tpu_custom_call.1']
    %16 = vsyncpa [#allocation4], 0
    // Predicated region
    $region2: #{tpu_custom_call.1} parent=1 // pred_check
      _
    $region3: #{tpu_custom_call.1} parent=1 // pred_check_branch
      %18 = sbr.rel (0) target = $region5
    $region4: #{tpu_custom_call.1} parent=1 // pred_region
      _
    $region5: #{tpu_custom_call.1} parent=1 // pred_fallthru
      _
    // Predicated region
    $region6: #{tpu_custom_call.1} parent=1 // pred_check
      _
    $region7: #{tpu_custom_call.1} parent=1 // pred_check_branch
      %20 = sbr.rel (0) target = $region9
    $region8: #{tpu_custom_call.1} parent=1 // pred_region
      _
    $region9: #{tpu_custom_call.1} parent=1 // pred_fallthru
      _
    // Predicated region
    $region10: #{tpu_custom_call.1} parent=1 // pred_check
      _
    $region11: #{tpu_custom_call.1} parent=1 // pred_check_branch
      %22 = sbr.rel (0) target = $region13
    $region12: #{tpu_custom_call.1} parent=1 // pred_region
      _
    $region13: #{tpu_custom_call.1} parent=1 // pred_fallthru
      _
    // Predicated region
    $region14: #{tpu_custom_call.1} parent=1 // pred_check
      _
    $region15: #{tpu_custom_call.1} parent=1 // pred_check_branch
      %24 = sbr.rel (0) target = $region17
    $region16: #{tpu_custom_call.1} parent=1 // pred_region
      _
    $region17: #{tpu_custom_call.1} parent=1 // pred_fallthru
      _
    // Predicated region
    $region18: #{tpu_custom_call.1} parent=1 // pred_check
      _
    $region19: #{tpu_custom_call.1} parent=1 // pred_check_branch
      %26 = sbr.rel (0) target = $region21
    $region20: #{tpu_custom_call.1} parent=1 // pred_region
      _
    $region21: #{tpu_custom_call.1} parent=1 // pred_fallthru
      _
    // Predicated region
    $region22: #{tpu_custom_call.1} parent=1 // pred_check
      _
    $region23: #{tpu_custom_call.1} parent=1 // pred_check_branch
      %28 = sbr.rel (0) target = $region25
    $region24: #{tpu_custom_call.1} parent=1 // pred_region
      _
    $region25: #{tpu_custom_call.1} parent=1 // pred_fallthru
      _
    // Predicated region
    $region26: #{tpu_custom_call.1} parent=1 // pred_check
      _
    $region27: #{tpu_custom_call.1} parent=1 // pred_check_branch
      %30 = sbr.rel (0) target = $region29
    $region28: #{tpu_custom_call.1} parent=1 // pred_region
      _
    $region29: #{tpu_custom_call.1} parent=1 // pred_fallthru
      _
    // Predicated region
    $region30: #{tpu_custom_call.1} parent=1 // pred_check
      _
    $region31: #{tpu_custom_call.1} parent=1 // pred_check_branch
      %32 = sbr.rel (0) target = $region33
    $region32: #{tpu_custom_call.1} parent=1 // pred_region
      _
    $region33: #{tpu_custom_call.1} parent=1 // pred_fallthru
      _
    // Predicated region
    $region34: #{tpu_custom_call.1} parent=1 // pred_check
      _
    $region35: #{tpu_custom_call.1} parent=1 // pred_check_branch
      %34 = sbr.rel (0) target = $region37
    $region36: #{tpu_custom_call.1} parent=1 // pred_region
      _
    $region37: #{tpu_custom_call.1} parent=1 // pred_fallthru
      _
    %v35 = vld [vmem:[%s2] sm:$0xff]
    %v36 = vld [vmem:[%s2 + $0x8] sm:$0xff]
    %v37 = vld [vmem:[%s2 + $0x10] sm:$0xff]
    %v38 = vld [vmem:[%s2 + $0x18] sm:$0xff]
    %v39 = vld [vmem:[%s2 + $0x20] sm:$0xff]
    %v40 = vld [vmem:[%s2 + $0x28] sm:$0xff]
    %v41 = vld [vmem:[%s2 + $0x30] sm:$0xff]
    %v42 = vld [vmem:[%s2 + $0x38] sm:$0xff]
    %v43 = vld [vmem:[%s0] sm:$0xff]
    %v44 = vld [vmem:[%s0 + $0x8] sm:$0xff]
    %v45 = vld [vmem:[%s0 + $0x10] sm:$0xff]
    %v46 = vld [vmem:[%s0 + $0x18] sm:$0xff]
    %v47 = vld [vmem:[%s0 + $0x20] sm:$0xff]
    %v48 = vld [vmem:[%s0 + $0x28] sm:$0xff]
    %v49 = vld [vmem:[%s0 + $0x30] sm:$0xff]
    %v50 = vld [vmem:[%s0 + $0x38] sm:$0xff]
    %v51 = vld [vmem:[%s0 + $0x40] sm:$0xff]
    %v52 = vld [vmem:[%s0 + $0x48] sm:$0xff]
    %v53 = vld [vmem:[%s0 + $0x50] sm:$0xff]
    %v54 = vld [vmem:[%s0 + $0x58] sm:$0xff]
    %v55 = vld [vmem:[%s0 + $0x60] sm:$0xff]
    %v56 = vld [vmem:[%s0 + $0x68] sm:$0xff]
    %v57 = vld [vmem:[%s0 + $0x70] sm:$0xff]
    %v58 = vld [vmem:[%s0 + $0x78] sm:$0xff]
    %v59 = vld [vmem:[%s3] sm:$0xff]
    %v60 = vld [vmem:[%s3 + $0x8] sm:$0xff]
    %v61 = vld [vmem:[%s3 + $0x10] sm:$0xff]
    %v62 = vld [vmem:[%s3 + $0x18] sm:$0xff]
    %v63 = vld [vmem:[%s3 + $0x20] sm:$0xff]
    %v64 = vld [vmem:[%s3 + $0x28] sm:$0xff]
    %v65 = vld [vmem:[%s3 + $0x30] sm:$0xff]
    %v66 = vld [vmem:[%s3 + $0x38] sm:$0xff]
    %v67 = vld [vmem:[%s1] sm:$0xff]
    %v68 = vld [vmem:[%s1 + $0x8] sm:$0xff]
    %v69 = vld [vmem:[%s1 + $0x10] sm:$0xff]
    %v70 = vld [vmem:[%s1 + $0x18] sm:$0xff]
    %v71 = vld [vmem:[%s1 + $0x20] sm:$0xff]
    %v72 = vld [vmem:[%s1 + $0x28] sm:$0xff]
    %v73 = vld [vmem:[%s1 + $0x30] sm:$0xff]
    %v74 = vld [vmem:[%s1 + $0x38] sm:$0xff]
    %v75 = vld [vmem:[%s1 + $0x40] sm:$0xff]
    %v76 = vld [vmem:[%s1 + $0x48] sm:$0xff]
    %v77 = vld [vmem:[%s1 + $0x50] sm:$0xff]
    %v78 = vld [vmem:[%s1 + $0x58] sm:$0xff]
    %v79 = vld [vmem:[%s1 + $0x60] sm:$0xff]
    %v80 = vld [vmem:[%s1 + $0x68] sm:$0xff]
    %v81 = vld [vmem:[%s1 + $0x70] sm:$0xff]
    %v82 = vld [vmem:[%s1 + $0x78] sm:$0xff]
    %v83 = vld [vmem:[%s6] sm:$0xff]
    %v84 = vld [vmem:[%s6 + $0x8] sm:$0xff]
    %v85 = vld [vmem:[%s6 + $0x10] sm:$0xff]
    %v86 = vld [vmem:[%s6 + $0x18] sm:$0xff]
    %v87 = vld [vmem:[%s6 + $0x20] sm:$0xff]
    %v88 = vld [vmem:[%s6 + $0x28] sm:$0xff]
    %v89 = vld [vmem:[%s6 + $0x30] sm:$0xff]
    %v90 = vld [vmem:[%s6 + $0x38] sm:$0xff]
    %92 = vset.pattern.permute.xlu0 0
    %93 = vperm.xlu0 %92, %v83
    %v94 = vpop.permute.xlu0 %93
    %97 = vset.pattern.permute.xlu0 0
    %98 = vperm.xlu0 %97, %v84
    %v99 = vpop.permute.xlu0 %98
    %102 = vset.pattern.permute.xlu0 0
    %103 = vperm.xlu0 %102, %v85
    %v104 = vpop.permute.xlu0 %103
    %107 = vset.pattern.permute.xlu0 0
    %108 = vperm.xlu0 %107, %v86
    %v109 = vpop.permute.xlu0 %108
    %112 = vset.pattern.permute.xlu0 0
    %113 = vperm.xlu0 %112, %v87
    %v114 = vpop.permute.xlu0 %113
    %117 = vset.pattern.permute.xlu0 0
    %118 = vperm.xlu0 %117, %v88
    %v119 = vpop.permute.xlu0 %118
    %122 = vset.pattern.permute.xlu0 0
    %123 = vperm.xlu0 %122, %v89
    %v124 = vpop.permute.xlu0 %123
    %127 = vset.pattern.permute.xlu0 0
    %128 = vperm.xlu0 %127, %v90
    %v129 = vpop.permute.xlu0 %128
    %vm131 = vcmask 105472
    %v133 = vsel %vm131, %v35, 0
    %v136 = vsel %vm131, %v36, 0
    %v139 = vsel %vm131, %v37, 0
    %v142 = vsel %vm131, %v38, 0
    %v145 = vsel %vm131, %v39, 0
    %v148 = vsel %vm131, %v40, 0
    %v151 = vsel %vm131, %v41, 0
    %v154 = vsel %vm131, %v42, 0
    %v157 = vsel %vm131, %v43, 0
    %v160 = vsel %vm131, %v44, 0
    %v163 = vsel %vm131, %v45, 0
    %v166 = vsel %vm131, %v46, 0
    %v169 = vsel %vm131, %v47, 0
    %v172 = vsel %vm131, %v48, 0
    %v175 = vsel %vm131, %v49, 0
    %v178 = vsel %vm131, %v50, 0
    %v181 = vsel %vm131, %v51, 0
    %v184 = vsel %vm131, %v52, 0
    %v187 = vsel %vm131, %v53, 0
    %v190 = vsel %vm131, %v54, 0
    %v193 = vsel %vm131, %v55, 0
    %v196 = vsel %vm131, %v56, 0
    %v199 = vsel %vm131, %v57, 0
    %v202 = vsel %vm131, %v58, 0
    %204 = vmatprep.subr.mxu0 0.0
    %205 = vmatpush1.xpose.msra.mxu0 %v157
    %206 = vmatprep.subr.mxu0 0.0
    %207 = vmatpush1.xpose.msra.mxu0 %v160
    %208 = vmatprep.subr.mxu0 0.0
    %209 = vmatpush1.xpose.msra.mxu0 %v163
    %210 = vmatprep.subr.mxu0 0.0
    %211 = vmatpush1.xpose.msra.mxu0 %v166
    %212 = vmatprep.subr.mxu0 0.0
    %213 = vmatpush1.xpose.msra.mxu0 %v169
    %214 = vmatprep.subr.mxu0 0.0
    %215 = vmatpush1.xpose.msra.mxu0 %v172
    %216 = vmatprep.subr.mxu0 0.0
    %217 = vmatpush1.xpose.msra.mxu0 %v175
    %218 = vmatprep.subr.mxu0 0.0
    %219 = vmatpush1.xpose.msra.mxu0 %v178
    %220 = vmatprep.subr.mxu0 0.0
    %221 = vmatpush1.xpose.msra.mxu0 %v181
    %222 = vmatprep.subr.mxu0 0.0
    %223 = vmatpush1.xpose.msra.mxu0 %v184
    %224 = vmatprep.subr.mxu0 0.0
    %225 = vmatpush1.xpose.msra.mxu0 %v187
    %226 = vmatprep.subr.mxu0 0.0
    %227 = vmatpush1.xpose.msra.mxu0 %v190
    %228 = vmatprep.subr.mxu0 0.0
    %229 = vmatpush1.xpose.msra.mxu0 %v193
    %230 = vmatprep.subr.mxu0 0.0
    %231 = vmatpush1.xpose.msra.mxu0 %v196
    %232 = vmatprep.subr.mxu0 0.0
    %233 = vmatpush1.xpose.msra.mxu0 %v199
    %234 = vmatprep.subr.mxu0 0.0
    %235 = vmatpush1.xpose.msra.mxu0 %v202
    %236 = vmatprep.subr.mxu0 0.0
    %237 = vmatpush1.xpose.msra.mxu0 0.0
    %238 = vmatprep.subr.mxu0 0.0
    %239 = vmatpush1.xpose.msra.mxu0 0.0
    %240 = vmatprep.subr.mxu0 0.0
    %241 = vmatpush1.xpose.msra.mxu0 0.0
    %242 = vmatprep.subr.mxu0 0.0
    %243 = vmatpush1.xpose.msra.mxu0 0.0
    %244 = vmatprep.subr.mxu0 0.0
    %245 = vmatpush1.xpose.msra.mxu0 0.0
    %246 = vmatprep.subr.mxu0 0.0
    %247 = vmatpush1.xpose.msra.mxu0 0.0
    %248 = vmatprep.subr.mxu0 0.0
    %249 = vmatpush1.xpose.msra.mxu0 0.0
    %250 = vmatprep.subr.mxu0 0.0
    %251 = vmatpush1.xpose.msra.mxu0 0.0
    %252 = vmatprep.subr.mxu0 0.0
    %253 = vmatpush1.xpose.msra.mxu0 0.0
    %254 = vmatprep.subr.mxu0 0.0
    %255 = vmatpush1.xpose.msra.mxu0 0.0
    %256 = vmatprep.subr.mxu0 0.0
    %257 = vmatpush1.xpose.msra.mxu0 0.0
    %258 = vmatprep.subr.mxu0 0.0
    %259 = vmatpush1.xpose.msra.mxu0 0.0
    %260 = vmatprep.subr.mxu0 0.0
    %261 = vmatpush1.xpose.msra.mxu0 0.0
    %262 = vmatprep.subr.mxu0 0.0
    %263 = vmatpush1.xpose.msra.mxu0 0.0
    %264 = vmatprep.subr.mxu0 0.0
    %265 = vmatpush1.xpose.msra.mxu0 0.0
    %266 = vmatprep.subr.mxu0 0.0
    %267 = vmatpush1.xpose.msra.mxu0 0.0
    %268 = vmatprep.mubr.f32.mxu0 0.0
    %269 = vmatmul.mubr.f32.gmra.mrb[0].mxu0 %v133
    %v270 = vpop.f32.mrb[0].mxu0
    %v271 = vadd.f32 %v94, %v270
    %v272 = vpop.f32.mrb[0].mxu0
    %273 = vmatprep.mubr.f32.mxu0 0.0
    %274 = vmatmul.mubr.f32.gmra.mrb[0].mxu0 %v136
    %v275 = vpop.f32.mrb[0].mxu0
    %v276 = vadd.f32 %v99, %v275
    %v277 = vpop.f32.mrb[0].mxu0
    %278 = vmatprep.mubr.f32.mxu0 0.0
    %279 = vmatmul.mubr.f32.gmra.mrb[0].mxu0 %v139
    %v280 = vpop.f32.mrb[0].mxu0
    %v281 = vadd.f32 %v104, %v280
    %v282 = vpop.f32.mrb[0].mxu0
    %283 = vmatprep.mubr.f32.mxu0 0.0
    %284 = vmatmul.mubr.f32.gmra.mrb[0].mxu0 %v142
    %v285 = vpop.f32.mrb[0].mxu0
    %v286 = vadd.f32 %v109, %v285
    %v287 = vpop.f32.mrb[0].mxu0
    %288 = vmatprep.mubr.f32.mxu0 0.0
    %289 = vmatmul.mubr.f32.gmra.mrb[0].mxu0 %v145
    %v290 = vpop.f32.mrb[0].mxu0
    %v291 = vadd.f32 %v114, %v290
    %v292 = vpop.f32.mrb[0].mxu0
    %293 = vmatprep.mubr.f32.mxu0 0.0
    %294 = vmatmul.mubr.f32.gmra.mrb[0].mxu0 %v148
    %v295 = vpop.f32.mrb[0].mxu0
    %v296 = vadd.f32 %v119, %v295
    %v297 = vpop.f32.mrb[0].mxu0
    %298 = vmatprep.mubr.f32.mxu0 0.0
    %299 = vmatmul.mubr.f32.gmra.mrb[0].mxu0 %v151
    %v300 = vpop.f32.mrb[0].mxu0
    %v301 = vadd.f32 %v124, %v300
    %v302 = vpop.f32.mrb[0].mxu0
    %303 = vmatprep.mubr.f32.mxu0 0.0
    %304 = vmatmul.mubr.f32.gmra.mrb[0].mxu0 %v154
    %v305 = vpop.f32.mrb[0].mxu0
    %v306 = vadd.f32 %v129, %v305
    %v307 = vpop.f32.mrb[0].mxu0
    %308 = vdwg.mxu0
    %v309 = vmax.f32 %v271, 0.0
    %v310 = vmax.f32 %v276, 0.0
    %v311 = vmax.f32 %v281, 0.0
    %v312 = vmax.f32 %v286, 0.0
    %v313 = vmax.f32 %v291, 0.0
    %v314 = vmax.f32 %v296, 0.0
    %v315 = vmax.f32 %v301, 0.0
    %v316 = vmax.f32 %v306, 0.0
    %v317 = vld [vmem:[%s6 + $0x40] sm:$0xff]
    %v318 = vld [vmem:[%s6 + $0x48] sm:$0xff]
    %v319 = vld [vmem:[%s6 + $0x50] sm:$0xff]
    %v320 = vld [vmem:[%s6 + $0x58] sm:$0xff]
    %v321 = vld [vmem:[%s6 + $0x60] sm:$0xff]
    %v322 = vld [vmem:[%s6 + $0x68] sm:$0xff]
    %v323 = vld [vmem:[%s6 + $0x70] sm:$0xff]
    %v324 = vld [vmem:[%s6 + $0x78] sm:$0xff]
    %326 = vset.pattern.permute.xlu0 0
    %327 = vperm.xlu0 %326, %v317
    %v328 = vpop.permute.xlu0 %327
    %331 = vset.pattern.permute.xlu0 0
    %332 = vperm.xlu0 %331, %v318
    %v333 = vpop.permute.xlu0 %332
    %336 = vset.pattern.permute.xlu0 0
    %337 = vperm.xlu0 %336, %v319
    %v338 = vpop.permute.xlu0 %337
    %341 = vset.pattern.permute.xlu0 0
    %342 = vperm.xlu0 %341, %v320
    %v343 = vpop.permute.xlu0 %342
    %346 = vset.pattern.permute.xlu0 0
    %347 = vperm.xlu0 %346, %v321
    %v348 = vpop.permute.xlu0 %347
    %351 = vset.pattern.permute.xlu0 0
    %352 = vperm.xlu0 %351, %v322
    %v353 = vpop.permute.xlu0 %352
    %356 = vset.pattern.permute.xlu0 0
    %357 = vperm.xlu0 %356, %v323
    %v358 = vpop.permute.xlu0 %357
    %361 = vset.pattern.permute.xlu0 0
    %362 = vperm.xlu0 %361, %v324
    %v363 = vpop.permute.xlu0 %362
    %vm365 = vcmask 31744
    %v367 = vsel %vm365, %v59, 0
    %v370 = vsel %vm365, %v60, 0
    %v373 = vsel %vm365, %v61, 0
    %v376 = vsel %vm365, %v62, 0
    %v379 = vsel %vm365, %v63, 0
    %v382 = vsel %vm365, %v64, 0
    %v385 = vsel %vm365, %v65, 0
    %v388 = vsel %vm365, %v66, 0
    %v391 = vsel %vm365, %v67, 0
    %v394 = vsel %vm365, %v68, 0
    %v397 = vsel %vm365, %v69, 0
    %v400 = vsel %vm365, %v70, 0
    %v403 = vsel %vm365, %v71, 0
    %v406 = vsel %vm365, %v72, 0
    %v409 = vsel %vm365, %v73, 0
    %v412 = vsel %vm365, %v74, 0
    %v415 = vsel %vm365, %v75, 0
    %v418 = vsel %vm365, %v76, 0
    %v421 = vsel %vm365, %v77, 0
    %v424 = vsel %vm365, %v78, 0
    %v427 = vsel %vm365, %v79, 0
    %v430 = vsel %vm365, %v80, 0
    %v433 = vsel %vm365, %v81, 0
    %v436 = vsel %vm365, %v82, 0
    %438 = vmatprep.subr.mxu0 0.0
    %439 = vmatpush1.xpose.msra.mxu0 %v391
    %440 = vmatprep.subr.mxu0 0.0
    %441 = vmatpush1.xpose.msra.mxu0 %v394
    %442 = vmatprep.subr.mxu0 0.0
    %443 = vmatpush1.xpose.msra.mxu0 %v397
    %444 = vmatprep.subr.mxu0 0.0
    %445 = vmatpush1.xpose.msra.mxu0 %v400
    %446 = vmatprep.subr.mxu0 0.0
    %447 = vmatpush1.xpose.msra.mxu0 %v403
    %448 = vmatprep.subr.mxu0 0.0
    %449 = vmatpush1.xpose.msra.mxu0 %v406
    %450 = vmatprep.subr.mxu0 0.0
    %451 = vmatpush1.xpose.msra.mxu0 %v409
    %452 = vmatprep.subr.mxu0 0.0
    %453 = vmatpush1.xpose.msra.mxu0 %v412
    %454 = vmatprep.subr.mxu0 0.0
    %455 = vmatpush1.xpose.msra.mxu0 %v415
    %456 = vmatprep.subr.mxu0 0.0
    %457 = vmatpush1.xpose.msra.mxu0 %v418
    %458 = vmatprep.subr.mxu0 0.0
    %459 = vmatpush1.xpose.msra.mxu0 %v421
    %460 = vmatprep.subr.mxu0 0.0
    %461 = vmatpush1.xpose.msra.mxu0 %v424
    %462 = vmatprep.subr.mxu0 0.0
    %463 = vmatpush1.xpose.msra.mxu0 %v427
    %464 = vmatprep.subr.mxu0 0.0
    %465 = vmatpush1.xpose.msra.mxu0 %v430
    %466 = vmatprep.subr.mxu0 0.0
    %467 = vmatpush1.xpose.msra.mxu0 %v433
    %468 = vmatprep.subr.mxu0 0.0
    %469 = vmatpush1.xpose.msra.mxu0 %v436
    %470 = vmatprep.subr.mxu0 0.0
    %471 = vmatpush1.xpose.msra.mxu0 0.0
    %472 = vmatprep.subr.mxu0 0.0
    %473 = vmatpush1.xpose.msra.mxu0 0.0
    %474 = vmatprep.subr.mxu0 0.0
    %475 = vmatpush1.xpose.msra.mxu0 0.0
    %476 = vmatprep.subr.mxu0 0.0
    %477 = vmatpush1.xpose.msra.mxu0 0.0
    %478 = vmatprep.subr.mxu0 0.0
    %479 = vmatpush1.xpose.msra.mxu0 0.0
    %480 = vmatprep.subr.mxu0 0.0
    %481 = vmatpush1.xpose.msra.mxu0 0.0
    %482 = vmatprep.subr.mxu0 0.0
    %483 = vmatpush1.xpose.msra.mxu0 0.0
    %484 = vmatprep.subr.mxu0 0.0
    %485 = vmatpush1.xpose.msra.mxu0 0.0
    %486 = vmatprep.subr.mxu0 0.0
    %487 = vmatpush1.xpose.msra.mxu0 0.0
    %488 = vmatprep.subr.mxu0 0.0
    %489 = vmatpush1.xpose.msra.mxu0 0.0
    %490 = vmatprep.subr.mxu0 0.0
    %491 = vmatpush1.xpose.msra.mxu0 0.0
    %492 = vmatprep.subr.mxu0 0.0
    %493 = vmatpush1.xpose.msra.mxu0 0.0
    %494 = vmatprep.subr.mxu0 0.0
    %495 = vmatpush1.xpose.msra.mxu0 0.0
    %496 = vmatprep.subr.mxu0 0.0
    %497 = vmatpush1.xpose.msra.mxu0 0.0
    %498 = vmatprep.subr.mxu0 0.0
    %499 = vmatpush1.xpose.msra.mxu0 0.0
    %500 = vmatprep.subr.mxu0 0.0
    %501 = vmatpush1.xpose.msra.mxu0 0.0
    %502 = vmatprep.mubr.f32.mxu0 0.0
    %503 = vmatmul.mubr.f32.gmra.mrb[0].mxu0 %v367
    %v504 = vpop.f32.mrb[0].mxu0
    %v505 = vadd.f32 %v328, %v504
    %v506 = vpop.f32.mrb[0].mxu0
    %507 = vmatprep.mubr.f32.mxu0 0.0
    %508 = vmatmul.mubr.f32.gmra.mrb[0].mxu0 %v370
    %v509 = vpop.f32.mrb[0].mxu0
    %v510 = vadd.f32 %v333, %v509
    %v511 = vpop.f32.mrb[0].mxu0
    %512 = vmatprep.mubr.f32.mxu0 0.0
    %513 = vmatmul.mubr.f32.gmra.mrb[0].mxu0 %v373
    %v514 = vpop.f32.mrb[0].mxu0
    %v515 = vadd.f32 %v338, %v514
    %v516 = vpop.f32.mrb[0].mxu0
    %517 = vmatprep.mubr.f32.mxu0 0.0
    %518 = vmatmul.mubr.f32.gmra.mrb[0].mxu0 %v376
    %v519 = vpop.f32.mrb[0].mxu0
    %v520 = vadd.f32 %v343, %v519
    %v521 = vpop.f32.mrb[0].mxu0
    %522 = vmatprep.mubr.f32.mxu0 0.0
    %523 = vmatmul.mubr.f32.gmra.mrb[0].mxu0 %v379
    %v524 = vpop.f32.mrb[0].mxu0
    %v525 = vadd.f32 %v348, %v524
    %v526 = vpop.f32.mrb[0].mxu0
    %527 = vmatprep.mubr.f32.mxu0 0.0
    %528 = vmatmul.mubr.f32.gmra.mrb[0].mxu0 %v382
    %v529 = vpop.f32.mrb[0].mxu0
    %v530 = vadd.f32 %v353, %v529
    %v531 = vpop.f32.mrb[0].mxu0
    %532 = vmatprep.mubr.f32.mxu0 0.0
    %533 = vmatmul.mubr.f32.gmra.mrb[0].mxu0 %v385
    %v534 = vpop.f32.mrb[0].mxu0
    %v535 = vadd.f32 %v358, %v534
    %v536 = vpop.f32.mrb[0].mxu0
    %537 = vmatprep.mubr.f32.mxu0 0.0
    %538 = vmatmul.mubr.f32.gmra.mrb[0].mxu0 %v388
    %v539 = vpop.f32.mrb[0].mxu0
    %v540 = vadd.f32 %v363, %v539
    %v541 = vpop.f32.mrb[0].mxu0
    %542 = vdwg.mxu0
    %v543 = vmax.f32 %v505, 0.0
    %v544 = vmax.f32 %v510, 0.0
    %v545 = vmax.f32 %v515, 0.0
    %v546 = vmax.f32 %v520, 0.0
    %v547 = vmax.f32 %v525, 0.0
    %v548 = vmax.f32 %v530, 0.0
    %v549 = vmax.f32 %v535, 0.0
    %v550 = vmax.f32 %v540, 0.0
    %v551 = vld [vmem:[%s4] sm:$0xff]
    %v552 = vld [vmem:[%s4 + $0x8] sm:$0xff]
    %v553 = vld [vmem:[%s4 + $0x10] sm:$0xff]
    %v554 = vld [vmem:[%s4 + $0x18] sm:$0xff]
    %v555 = vld [vmem:[%s4 + $0x20] sm:$0xff]
    %v556 = vld [vmem:[%s4 + $0x28] sm:$0xff]
    %v557 = vld [vmem:[%s4 + $0x30] sm:$0xff]
    %v558 = vld [vmem:[%s4 + $0x38] sm:$0xff]
    %vm559 = vcmask 523264
    %v561 = vsel %vm559, %v555, 0
    %v564 = vsel %vm559, %v556, 0
    %v567 = vsel %vm559, %v557, 0
    %v570 = vsel %vm559, %v558, 0
    %572 = vmatprep.subr.mxu0 0.0
    %573 = vmatpush1.msra.mxu0 %v543
    %574 = vmatprep.subr.mxu0 0.0
    %575 = vmatpush1.msra.mxu0 %v544
    %576 = vmatprep.subr.mxu0 0.0
    %577 = vmatpush1.msra.mxu0 %v545
    %578 = vmatprep.subr.mxu0 0.0
    %579 = vmatpush1.msra.mxu0 %v546
    %580 = vmatprep.subr.mxu0 0.0
    %581 = vmatpush1.msra.mxu0 %v547
    %582 = vmatprep.subr.mxu0 0.0
    %583 = vmatpush1.msra.mxu0 %v548
    %584 = vmatprep.subr.mxu0 0.0
    %585 = vmatpush1.msra.mxu0 %v549
    %586 = vmatprep.subr.mxu0 0.0
    %587 = vmatpush1.msra.mxu0 %v550
    %588 = vmatprep.subr.mxu0 0.0
    %589 = vmatpush1.msra.mxu0 0.0
    %590 = vmatprep.subr.mxu0 0.0
    %591 = vmatpush1.msra.mxu0 0.0
    %592 = vmatprep.subr.mxu0 0.0
    %593 = vmatpush1.msra.mxu0 0.0
    %594 = vmatprep.subr.mxu0 0.0
    %595 = vmatpush1.msra.mxu0 0.0
    %596 = vmatprep.subr.mxu0 0.0
    %597 = vmatpush1.msra.mxu0 0.0
    %598 = vmatprep.subr.mxu0 0.0
    %599 = vmatpush1.msra.mxu0 0.0
    %600 = vmatprep.subr.mxu0 0.0
    %601 = vmatpush1.msra.mxu0 0.0
    %602 = vmatprep.subr.mxu0 0.0
    %603 = vmatpush1.msra.mxu0 0.0
    %604 = vmatprep.subr.mxu0 0.0
    %605 = vmatpush1.msra.mxu0 0.0
    %606 = vmatprep.subr.mxu0 0.0
    %607 = vmatpush1.msra.mxu0 0.0
    %608 = vmatprep.subr.mxu0 0.0
    %609 = vmatpush1.msra.mxu0 0.0
    %610 = vmatprep.subr.mxu0 0.0
    %611 = vmatpush1.msra.mxu0 0.0
    %612 = vmatprep.subr.mxu0 0.0
    %613 = vmatpush1.msra.mxu0 0.0
    %614 = vmatprep.subr.mxu0 0.0
    %615 = vmatpush1.msra.mxu0 0.0
    %616 = vmatprep.subr.mxu0 0.0
    %617 = vmatpush1.msra.mxu0 0.0
    %618 = vmatprep.subr.mxu0 0.0
    %619 = vmatpush1.msra.mxu0 0.0
    %620 = vmatprep.subr.mxu0 0.0
    %621 = vmatpush1.msra.mxu0 0.0
    %622 = vmatprep.subr.mxu0 0.0
    %623 = vmatpush1.msra.mxu0 0.0
    %624 = vmatprep.subr.mxu0 0.0
    %625 = vmatpush1.msra.mxu0 0.0
    %626 = vmatprep.subr.mxu0 0.0
    %627 = vmatpush1.msra.mxu0 0.0
    %628 = vmatprep.subr.mxu0 0.0
    %629 = vmatpush1.msra.mxu0 0.0
    %630 = vmatprep.subr.mxu0 0.0
    %631 = vmatpush1.msra.mxu0 0.0
    %632 = vmatprep.subr.mxu0 0.0
    %633 = vmatpush1.msra.mxu0 0.0
    %634 = vmatprep.subr.mxu0 0.0
    %635 = vmatpush1.msra.mxu0 0.0
    %636 = vmatprep.mubr.f32.mxu0 0.0
    %637 = vmatmul.mubr.f32.gmra.mrb[0].mxu0 %v561
    %v638 = vpop.f32.mrb[0].mxu0
    %v639 = vadd.f32 0.0, %v638
    %v640 = vpop.f32.mrb[0].mxu0
    %641 = vmatprep.mubr.f32.mxu0 0.0
    %642 = vmatmul.mubr.f32.gmra.mrb[0].mxu0 %v564
    %v643 = vpop.f32.mrb[0].mxu0
    %v644 = vadd.f32 0.0, %v643
    %v645 = vpop.f32.mrb[0].mxu0
    %646 = vmatprep.mubr.f32.mxu0 0.0
    %647 = vmatmul.mubr.f32.gmra.mrb[0].mxu0 %v567
    %v648 = vpop.f32.mrb[0].mxu0
    %v649 = vadd.f32 0.0, %v648
    %v650 = vpop.f32.mrb[0].mxu0
    %651 = vmatprep.mubr.f32.mxu0 0.0
    %652 = vmatmul.mubr.f32.gmra.mrb[0].mxu0 %v570
    %v653 = vpop.f32.mrb[0].mxu0
    %v654 = vadd.f32 0.0, %v653
    %v655 = vpop.f32.mrb[0].mxu0
    %656 = vdwg.mxu0
    %v658 = vsel %vm559, %v551, 0
    %v661 = vsel %vm559, %v552, 0
    %v664 = vsel %vm559, %v553, 0
    %v667 = vsel %vm559, %v554, 0
    %669 = vmatprep.subr.mxu0 0.0
    %670 = vmatpush1.msra.mxu0 %v309
    %671 = vmatprep.subr.mxu0 0.0
    %672 = vmatpush1.msra.mxu0 %v310
    %673 = vmatprep.subr.mxu0 0.0
    %674 = vmatpush1.msra.mxu0 %v311
    %675 = vmatprep.subr.mxu0 0.0
    %676 = vmatpush1.msra.mxu0 %v312
    %677 = vmatprep.subr.mxu0 0.0
    %678 = vmatpush1.msra.mxu0 %v313
    %679 = vmatprep.subr.mxu0 0.0
    %680 = vmatpush1.msra.mxu0 %v314
    %681 = vmatprep.subr.mxu0 0.0
    %682 = vmatpush1.msra.mxu0 %v315
    %683 = vmatprep.subr.mxu0 0.0
    %684 = vmatpush1.msra.mxu0 %v316
    %685 = vmatprep.subr.mxu0 0.0
    %686 = vmatpush1.msra.mxu0 0.0
    %687 = vmatprep.subr.mxu0 0.0
    %688 = vmatpush1.msra.mxu0 0.0
    %689 = vmatprep.subr.mxu0 0.0
    %690 = vmatpush1.msra.mxu0 0.0
    %691 = vmatprep.subr.mxu0 0.0
    %692 = vmatpush1.msra.mxu0 0.0
    %693 = vmatprep.subr.mxu0 0.0
    %694 = vmatpush1.msra.mxu0 0.0
    %695 = vmatprep.subr.mxu0 0.0
    %696 = vmatpush1.msra.mxu0 0.0
    %697 = vmatprep.subr.mxu0 0.0
    %698 = vmatpush1.msra.mxu0 0.0
    %699 = vmatprep.subr.mxu0 0.0
    %700 = vmatpush1.msra.mxu0 0.0
    %701 = vmatprep.subr.mxu0 0.0
    %702 = vmatpush1.msra.mxu0 0.0
    %703 = vmatprep.subr.mxu0 0.0
    %704 = vmatpush1.msra.mxu0 0.0
    %705 = vmatprep.subr.mxu0 0.0
    %706 = vmatpush1.msra.mxu0 0.0
    %707 = vmatprep.subr.mxu0 0.0
    %708 = vmatpush1.msra.mxu0 0.0
    %709 = vmatprep.subr.mxu0 0.0
    %710 = vmatpush1.msra.mxu0 0.0
    %711 = vmatprep.subr.mxu0 0.0
    %712 = vmatpush1.msra.mxu0 0.0
    %713 = vmatprep.subr.mxu0 0.0
    %714 = vmatpush1.msra.mxu0 0.0
    %715 = vmatprep.subr.mxu0 0.0
    %716 = vmatpush1.msra.mxu0 0.0
    %717 = vmatprep.subr.mxu0 0.0
    %718 = vmatpush1.msra.mxu0 0.0
    %719 = vmatprep.subr.mxu0 0.0
    %720 = vmatpush1.msra.mxu0 0.0
    %721 = vmatprep.subr.mxu0 0.0
    %722 = vmatpush1.msra.mxu0 0.0
    %723 = vmatprep.subr.mxu0 0.0
    %724 = vmatpush1.msra.mxu0 0.0
    %725 = vmatprep.subr.mxu0 0.0
    %726 = vmatpush1.msra.mxu0 0.0
    %727 = vmatprep.subr.mxu0 0.0
    %728 = vmatpush1.msra.mxu0 0.0
    %729 = vmatprep.subr.mxu0 0.0
    %730 = vmatpush1.msra.mxu0 0.0
    %731 = vmatprep.subr.mxu0 0.0
    %732 = vmatpush1.msra.mxu0 0.0
    %733 = vmatprep.mubr.f32.mxu0 0.0
    %734 = vmatmul.mubr.f32.gmra.mrb[0].mxu0 %v658
    %v735 = vpop.f32.mrb[0].mxu0
    %v736 = vadd.f32 %v639, %v735
    %v737 = vpop.f32.mrb[0].mxu0
    %738 = vmatprep.mubr.f32.mxu0 0.0
    %739 = vmatmul.mubr.f32.gmra.mrb[0].mxu0 %v661
    %v740 = vpop.f32.mrb[0].mxu0
    %v741 = vadd.f32 %v644, %v740
    %v742 = vpop.f32.mrb[0].mxu0
    %743 = vmatprep.mubr.f32.mxu0 0.0
    %744 = vmatmul.mubr.f32.gmra.mrb[0].mxu0 %v664
    %v745 = vpop.f32.mrb[0].mxu0
    %v746 = vadd.f32 %v649, %v745
    %v747 = vpop.f32.mrb[0].mxu0
    %748 = vmatprep.mubr.f32.mxu0 0.0
    %749 = vmatmul.mubr.f32.gmra.mrb[0].mxu0 %v667
    %v750 = vpop.f32.mrb[0].mxu0
    %v751 = vadd.f32 %v654, %v750
    %v752 = vpop.f32.mrb[0].mxu0
    %753 = vdwg.mxu0
    %v754 = vld [vmem:[%s7] sm:$0xff]
    %v755 = vld [vmem:[%s7 + $0x8] sm:$0xff]
    %v756 = vld [vmem:[%s7 + $0x10] sm:$0xff]
    %v757 = vld [vmem:[%s7 + $0x18] sm:$0xff]
    %759 = vset.pattern.permute.xlu0 0
    %760 = vperm.xlu0 %759, %v754
    %v761 = vpop.permute.xlu0 %760
    %764 = vset.pattern.permute.xlu0 0
    %765 = vperm.xlu0 %764, %v755
    %v766 = vpop.permute.xlu0 %765
    %769 = vset.pattern.permute.xlu0 0
    %770 = vperm.xlu0 %769, %v756
    %v771 = vpop.permute.xlu0 %770
    %774 = vset.pattern.permute.xlu0 0
    %775 = vperm.xlu0 %774, %v757
    %v776 = vpop.permute.xlu0 %775
    %v778 = vadd.f32 %v736, %v761
    %v779 = vadd.f32 %v741, %v766
    %v780 = vadd.f32 %v746, %v771
    %v781 = vadd.f32 %v751, %v776
    %v782 = vmax.f32 %v778, 0.0
    %v783 = vmax.f32 %v779, 0.0
    %v784 = vmax.f32 %v780, 0.0
    %v785 = vmax.f32 %v781, 0.0
    %v786 = vld [vmem:[%s5] sm:$0x1]
    %v787 = vld [vmem:[#allocation2] sm:$0x1]
    %789 = vset.pattern.permute.xlu0 0
    %790 = vperm.xlu0 %789, %v787
    %v791 = vpop.permute.xlu0 %790
    %v793 = vlaneseq
    %v794 = vshrl.u32 %v793, 7
    %v795 = vsub.s32 0, %v794
    %v796 = vrot.slane %v791, %v795
    %vm797 = vcmask 261120
    %v799 = vsel %vm797, %v786, 0
    %801 = vmatprep.subr.mxu0 0.0
    %802 = vmatpush1.msra.mxu0 %v782
    %803 = vmatprep.subr.mxu0 0.0
    %804 = vmatpush1.msra.mxu0 %v783
    %805 = vmatprep.subr.mxu0 0.0
    %806 = vmatpush1.msra.mxu0 %v784
    %807 = vmatprep.subr.mxu0 0.0
    %808 = vmatpush1.msra.mxu0 %v785
    %809 = vmatprep.subr.mxu0 0.0
    %810 = vmatpush1.msra.mxu0 0.0
    %811 = vmatprep.subr.mxu0 0.0
    %812 = vmatpush1.msra.mxu0 0.0
    %813 = vmatprep.subr.mxu0 0.0
    %814 = vmatpush1.msra.mxu0 0.0
    %815 = vmatprep.subr.mxu0 0.0
    %816 = vmatpush1.msra.mxu0 0.0
    %817 = vmatprep.subr.mxu0 0.0
    %818 = vmatpush1.msra.mxu0 0.0
    %819 = vmatprep.subr.mxu0 0.0
    %820 = vmatpush1.msra.mxu0 0.0
    %821 = vmatprep.subr.mxu0 0.0
    %822 = vmatpush1.msra.mxu0 0.0
    %823 = vmatprep.subr.mxu0 0.0
    %824 = vmatpush1.msra.mxu0 0.0
    %825 = vmatprep.subr.mxu0 0.0
    %826 = vmatpush1.msra.mxu0 0.0
    %827 = vmatprep.subr.mxu0 0.0
    %828 = vmatpush1.msra.mxu0 0.0
    %829 = vmatprep.subr.mxu0 0.0
    %830 = vmatpush1.msra.mxu0 0.0
    %831 = vmatprep.subr.mxu0 0.0
    %832 = vmatpush1.msra.mxu0 0.0
    %833 = vmatprep.subr.mxu0 0.0
    %834 = vmatpush1.msra.mxu0 0.0
    %835 = vmatprep.subr.mxu0 0.0
    %836 = vmatpush1.msra.mxu0 0.0
    %837 = vmatprep.subr.mxu0 0.0
    %838 = vmatpush1.msra.mxu0 0.0
    %839 = vmatprep.subr.mxu0 0.0
    %840 = vmatpush1.msra.mxu0 0.0
    %841 = vmatprep.subr.mxu0 0.0
    %842 = vmatpush1.msra.mxu0 0.0
    %843 = vmatprep.subr.mxu0 0.0
    %844 = vmatpush1.msra.mxu0 0.0
    %845 = vmatprep.subr.mxu0 0.0
    %846 = vmatpush1.msra.mxu0 0.0
    %847 = vmatprep.subr.mxu0 0.0
    %848 = vmatpush1.msra.mxu0 0.0
    %849 = vmatprep.subr.mxu0 0.0
    %850 = vmatpush1.msra.mxu0 0.0
    %851 = vmatprep.subr.mxu0 0.0
    %852 = vmatpush1.msra.mxu0 0.0
    %853 = vmatprep.subr.mxu0 0.0
    %854 = vmatpush1.msra.mxu0 0.0
    %855 = vmatprep.subr.mxu0 0.0
    %856 = vmatpush1.msra.mxu0 0.0
    %857 = vmatprep.subr.mxu0 0.0
    %858 = vmatpush1.msra.mxu0 0.0
    %859 = vmatprep.subr.mxu0 0.0
    %860 = vmatpush1.msra.mxu0 0.0
    %861 = vmatprep.subr.mxu0 0.0
    %862 = vmatpush1.msra.mxu0 0.0
    %863 = vmatprep.subr.mxu0 0.0
    %864 = vmatpush1.msra.mxu0 0.0
    %865 = vmatprep.mubr.f32.mxu0 0.0
    %866 = vmatmul.mubr.f32.gmra.mrb[0].mxu0 %v799
    %v867 = vpop.f32.mrb[0].mxu0
    %v868 = vadd.f32 %v796, %v867
    %v869 = vpop.f32.mrb[0].mxu0
    %870 = vdwg.mxu0
    %871 = vst [vmem:[#allocation3] sm:$0x1] %v868
    // Predicated region
    $region38: #{tpu_custom_call.1} parent=1 // pred_check
      _
    $region39: #{tpu_custom_call.1} parent=1 // pred_check_branch
      %873 = sbr.rel (0) target = $region41
    $region40: #{tpu_custom_call.1} parent=1 // pred_region
      %s875 = ssub.s32 16, 16
      %876 = vsyncadd [#allocation4], %s875
      %s878 = sshll.u32 [#allocation3], 4
      %s879 = int_to_ptr.vmem [resolvable:$true] %s878
      %881 = dma.vmem_to_hbm [thread:$0]  %s879, 16, %s9, [#allocation4]
    $region41: #{tpu_custom_call.1} parent=1 // pred_fallthru
      _
    // Predicated region
    $region42: #{tpu_custom_call.1} parent=1 // pred_check
      _
    $region43: #{tpu_custom_call.1} parent=1 // pred_check_branch
      %883 = sbr.rel (0) target = $region45
    $region44: #{tpu_custom_call.1} parent=1 // pred_region
      %884 = dma.done [#allocation4], 16
    $region45: #{tpu_custom_call.1} parent=1 // pred_fallthru
      _
    %885 = vsyncpa [#allocation4], 1

</llo_original>
